<compile_context>
chip_gen: v7x
topology: tpu7x:2x2x1
jax: 0.10.0
libtpu: 0.0.40
codegen_flags: <defaults>
</compile_context>

<pallas_src>
import jax
import jax.numpy as jnp
from jax.experimental import pallas as pl
from jax.experimental.pallas import tpu as pltpu

_LANE = 128
_SUBLANE = 8


def _round_up(x, m):
    return ((x + m - 1) // m) * m


def _pick_tile(dim, target, unit=_LANE):
    """Largest multiple of `unit` <= target that divides `dim` (or `dim`)."""
    if dim <= target:
        return dim
    if dim % unit:
        # TODO(synk): pad/mask ragged dims instead of using one full block.
        return dim
    t = max(unit, (target // unit) * unit)
    while dim % t:
        t -= unit
    return t


# ---------------------------------------------------------------------------
# Generic tiled Linear: y = x @ W.T + b, PyTorch weight layout (out, in).
# ---------------------------------------------------------------------------
def _linear_kernel(x_ref, w_ref, b_ref, o_ref, acc_ref):
    # x_ref : (B , tk)   activation tile (contraction on last axis)
    # w_ref : (tn, tk)   weight tile, PyTorch (out_features, in_features) layout
    # b_ref : (1 , tn)   bias tile, float32
    # o_ref : (B , tn)   output tile
    # acc_ref: (B, tn)   float32 accumulator scratch (persists across k steps)
    k = pl.program_id(1)

    @pl.when(k == 0)
    def _init():
        # Bias added exactly once per output tile (hoisted out of the k loop).
        acc_ref[...] = jnp.broadcast_to(b_ref[...], acc_ref.shape)

    # Contract the last axis of both operands (x . W^T) so the MXU consumes the
    # PyTorch layout directly; bf16 operands, f32 accumulation.
    acc_ref[...] += jax.lax.dot_general(
        x_ref[...].astype(w_ref.dtype),
        w_ref[...],
        dimension_numbers=(((1,), (1,)), ((), ())),
        preferred_element_type=jnp.float32,
    )

    @pl.when(k == pl.num_programs(1) - 1)
    def _finalize():
        o_ref[...] = acc_ref[...].astype(o_ref.dtype)


def pallas_linear(x, w, b, *, tile_n=1024, tile_k=1024, out_dtype=None,
                  vmem_limit_bytes=48 * 1024 * 1024):
    """y = x @ w.T + b with w in PyTorch (out_features, in_features) layout."""
    B, K = x.shape
    N, Kw = w.shape
    assert K == Kw, (x.shape, w.shape)
    assert b.shape == (1, N), b.shape
    out_dtype = out_dtype or x.dtype

    tn = _pick_tile(N, tile_n)
    tk = _pick_tile(K, tile_k)
    n_tiles = N // tn
    k_tiles = K // tk

    return pl.pallas_call(
        _linear_kernel,
        out_shape=jax.ShapeDtypeStruct((B, N), out_dtype),
        grid_spec=pltpu.PrefetchScalarGridSpec(
            num_scalar_prefetch=0,
            grid=(n_tiles, k_tiles),
            in_specs=[
                pl.BlockSpec((B, tk), lambda j, k: (0, k)),   # activations
                pl.BlockSpec((tn, tk), lambda j, k: (j, k)),  # weight stream
                pl.BlockSpec((1, tn), lambda j, k: (0, j)),   # bias slice
            ],
            out_specs=pl.BlockSpec((B, tn), lambda j, k: (0, j)),
            scratch_shapes=[pltpu.VMEM((B, tn), jnp.float32)],
        ),
        compiler_params=pltpu.CompilerParams(
            dimension_semantics=("parallel", "arbitrary"),
            vmem_limit_bytes=vmem_limit_bytes,
        ),
    )(x, w, b)


# ---------------------------------------------------------------------------
# Word2Vec forward
# ---------------------------------------------------------------------------
def prepare_params(w1, b1, w2, b2, weight_dtype=jnp.bfloat16):
    """One-time (init-time) packing of PyTorch-layout parameters.

    Pads dims up to multiples of 128 and casts the weights to bf16 here, NOT
    per forward call, so the per-call path streams each weight exactly once.
    Biases stay float32 (elementwise tail stays f32 -> safe on v5e's VPU).
    """
    V, D = w1.shape
    assert w2.shape == (D, V)
    Dp = _round_up(D, _LANE)
    Vp = _round_up(V, _LANE)

    w1p = jnp.zeros((Vp, Dp), weight_dtype).at[:V, :D].set(w1.astype(weight_dtype))
    b1p = jnp.zeros((1, Vp), jnp.float32).at[0, :V].set(b1.astype(jnp.float32))
    w2p = jnp.zeros((Dp, Vp), weight_dtype).at[:D, :V].set(w2.astype(weight_dtype))
    b2p = jnp.zeros((1, Dp), jnp.float32).at[0, :D].set(b2.astype(jnp.float32))
    return {"w1": w1p, "b1": b1p, "w2": w2p, "b2": b2p}


def word2vec_forward(x, params):
    """Forward pass: Linear(D->V) then Linear(V->D). x: (B, D) float32."""
    B, D = x.shape
    Vp, Dp = params["w1"].shape
    Bp = _round_up(B, _SUBLANE)

    xp = x
    if (Bp, Dp) != (B, D):
        xp = jnp.zeros((Bp, Dp), x.dtype).at[:B, :D].set(x)

    h = pallas_linear(xp, params["w1"], params["b1"], out_dtype=jnp.float32)
    o = pallas_linear(h, params["w2"], params["b2"], out_dtype=x.dtype)
    return o[:B, :D]


# ---------------------------------------------------------------------------
# Init helpers + reference
# ---------------------------------------------------------------------------
def xavier_uniform(key, shape, dtype=jnp.float32):
    fan_out, fan_in = shape
    limit = (6.0 / (fan_in + fan_out)) ** 0.5
    return jax.random.uniform(key, shape, dtype, minval=-limit, maxval=limit)


def reference_forward(x, w1, b1, w2, b2, weight_dtype=jnp.bfloat16):
    """Plain-JAX reference mirroring the kernel's bf16 weight/activation cast."""
    hp = jax.lax.Precision.HIGHEST
    f32 = jnp.float32
    xq = x.astype(weight_dtype).astype(f32)
    w1q = w1.astype(weight_dtype).astype(f32)
    w2q = w2.astype(weight_dtype).astype(f32)
    h = jnp.dot(xq, w1q.T, precision=hp) + b1
    hq = h.astype(weight_dtype).astype(f32)
    return jnp.dot(hq, w2q.T, precision=hp) + b2


if __name__ == "__main__":
    dict_size = 256
    vector_size = 128
    batch = 8

    key = jax.random.PRNGKey(0)
    k_x, k_w1, k_b1, k_w2, k_b2 = jax.random.split(key, 5)

    x = jax.random.normal(k_x, (batch, dict_size), jnp.float32)

    # Parameters in PyTorch Linear layout: weight (out, in), bias (out,).
    w1 = xavier_uniform(k_w1, (vector_size, dict_size))
    b1 = jax.random.uniform(k_b1, (vector_size,), jnp.float32,
                            minval=-1.0 / (dict_size ** 0.5),
                            maxval=1.0 / (dict_size ** 0.5))
    w2 = xavier_uniform(k_w2, (dict_size, vector_size))
    b2 = jax.random.uniform(k_b2, (dict_size,), jnp.float32,
                            minval=-1.0 / (vector_size ** 0.5),
                            maxval=1.0 / (vector_size ** 0.5))

    # One-time parameter packing (transpose-free layout, bf16 cast, padding).
    params = prepare_params(w1, b1, w2, b2)

    fwd = jax.jit(word2vec_forward)
    out = fwd(x, params)
    out = jax.block_until_ready(out)

    ref = reference_forward(x, w1, b1, w2, b2)
    assert out.shape == (batch, dict_size)
    assert jnp.allclose(out, ref, atol=2e-3, rtol=2e-3), (
        float(jnp.max(jnp.abs(out - ref))))

    print("KERNEL_OK")
</pallas_src>

<mosaic_0001>
module attributes {stable_mosaic.version = 11 : i64} {
  func.func @_linear_kernel(%arg0: i32, %arg1: i32, %arg2: memref<8x128xf32, #tpu.memory_space<vmem>>, %arg3: memref<256x128xbf16, #tpu.memory_space<vmem>>, %arg4: memref<1x256xf32, #tpu.memory_space<vmem>>, %arg5: memref<8x256xf32, #tpu.memory_space<vmem>>, %arg6: memref<8x256xf32, #tpu.memory_space<vmem>>) attributes {dimension_semantics = [#tpu.dimension_semantics<parallel>, #tpu.dimension_semantics<arbitrary>], iteration_bounds = array<i64: 1, 1>, scalar_prefetch = 0 : i64, scratch_operands = 1 : i64, tpu.core_type = #tpu.core_type<tc>, window_params = [{transform_indices = @transform_0, window_bounds = array<i64: 8, 128>}, {transform_indices = @transform_1, window_bounds = array<i64: 256, 128>}, {transform_indices = @transform_2, window_bounds = array<i64: 1, 256>}, {transform_indices = @transform_3, window_bounds = array<i64: 8, 256>}]} {
    %c0_i32 = arith.constant 0 : i32
    %0 = arith.cmpi eq, %arg1, %c0_i32 : i32
    %1 = arith.extui %0 : i1 to i32
    %c0_i32_0 = arith.constant 0 : i32
    %2 = arith.cmpi ne, %1, %c0_i32_0 : i32
    scf.if %2 {
      %c0_10 = arith.constant 0 : index
      %c0_11 = arith.constant 0 : index
      %13 = vector.load %arg4[%c0_10, %c0_11] : memref<1x256xf32, #tpu.memory_space<vmem>>, vector<1x256xf32>
      %14 = vector.shape_cast %13 : vector<1x256xf32> to vector<1x256xf32>
      %15 = vector.broadcast %14 : vector<1x256xf32> to vector<8x256xf32>
      %c0_12 = arith.constant 0 : index
      %c0_13 = arith.constant 0 : index
      %16 = vector.load %arg6[%c0_12, %c0_13] : memref<8x256xf32, #tpu.memory_space<vmem>>, vector<8x256xf32>
      tpu.vector_store %arg6[%c0_12, %c0_13], %15 {strides = array<i32>} : memref<8x256xf32, #tpu.memory_space<vmem>>, vector<8x256xf32>,
    } else {
    }
    %c0 = arith.constant 0 : index
    %c0_1 = arith.constant 0 : index
    %3 = vector.load %arg6[%c0, %c0_1] : memref<8x256xf32, #tpu.memory_space<vmem>>, vector<8x256xf32>
    %c0_2 = arith.constant 0 : index
    %c0_3 = arith.constant 0 : index
    %4 = vector.load %arg2[%c0_2, %c0_3] : memref<8x128xf32, #tpu.memory_space<vmem>>, vector<8x128xf32>
    %5 = arith.truncf %4 : vector<8x128xf32> to vector<8x128xbf16>
    %c0_4 = arith.constant 0 : index
    %c0_5 = arith.constant 0 : index
    %6 = vector.load %arg3[%c0_4, %c0_5] : memref<256x128xbf16, #tpu.memory_space<vmem>>, vector<256x128xbf16>
    %cst = arith.constant dense<0.000000e+00> : vector<8x256xf32>
    %7 = tpu.matmul %5, %6, %cst {dimension_numbers = #tpu.dot_dimension_numbers<[1], [1], [0], [0], [0, 0, 1, 0], [], []>} : vector<8x128xbf16>, vector<256x128xbf16>, vector<8x256xf32> -> vector<8x256xf32>
    %8 = arith.addf %3, %7 : vector<8x256xf32>
    %c0_6 = arith.constant 0 : index
    %c0_7 = arith.constant 0 : index
    %9 = vector.load %arg6[%c0_6, %c0_7] : memref<8x256xf32, #tpu.memory_space<vmem>>, vector<8x256xf32>
    tpu.vector_store %arg6[%c0_6, %c0_7], %8 {strides = array<i32>} : memref<8x256xf32, #tpu.memory_space<vmem>>, vector<8x256xf32>,
    %c0_i32_8 = arith.constant 0 : i32
    %10 = arith.cmpi eq, %arg1, %c0_i32_8 : i32
    %11 = arith.extui %10 : i1 to i32
    %c0_i32_9 = arith.constant 0 : i32
    %12 = arith.cmpi ne, %11, %c0_i32_9 : i32
    scf.if %12 {
      %c0_10 = arith.constant 0 : index
      %c0_11 = arith.constant 0 : index
      %13 = vector.load %arg6[%c0_10, %c0_11] : memref<8x256xf32, #tpu.memory_space<vmem>>, vector<8x256xf32>
      %c0_12 = arith.constant 0 : index
      %c0_13 = arith.constant 0 : index
      %14 = vector.load %arg5[%c0_12, %c0_13] : memref<8x256xf32, #tpu.memory_space<vmem>>, vector<8x256xf32>
      tpu.vector_store %arg5[%c0_12, %c0_13], %13 {strides = array<i32>} : memref<8x256xf32, #tpu.memory_space<vmem>>, vector<8x256xf32>,
    } else {
    }
    return
  }
  func.func @transform_0(%arg0: i32, %arg1: i32) -> (i32, i32) {
    %c0_i32 = arith.constant 0 : i32
    %c0_i32_0 = arith.constant 0 : i32
    return %c0_i32, %arg1 : i32, i32
  }
  func.func @transform_1(%arg0: i32, %arg1: i32) -> (i32, i32) {
    %c0_i32 = arith.constant 0 : i32
    return %arg0, %arg1 : i32, i32
  }
  func.func @transform_2(%arg0: i32, %arg1: i32) -> (i32, i32) {
    %c0_i32 = arith.constant 0 : i32
    %c0_i32_0 = arith.constant 0 : i32
    return %c0_i32, %arg0 : i32, i32
  }
  func.func @transform_3(%arg0: i32, %arg1: i32) -> (i32, i32) {
    %c0_i32 = arith.constant 0 : i32
    %c0_i32_0 = arith.constant 0 : i32
    return %c0_i32, %arg0 : i32, i32
  }
}

module attributes {stable_mosaic.version = 11 : i64} {
  func.func @_linear_kernel(%arg0: i32, %arg1: i32, %arg2: memref<8x256xf32, #tpu.memory_space<vmem>>, %arg3: memref<128x256xbf16, #tpu.memory_space<vmem>>, %arg4: memref<1x128xf32, #tpu.memory_space<vmem>>, %arg5: memref<8x128xf32, #tpu.memory_space<vmem>>, %arg6: memref<8x128xf32, #tpu.memory_space<vmem>>) attributes {dimension_semantics = [#tpu.dimension_semantics<parallel>, #tpu.dimension_semantics<arbitrary>], iteration_bounds = array<i64: 1, 1>, scalar_prefetch = 0 : i64, scratch_operands = 1 : i64, tpu.core_type = #tpu.core_type<tc>, window_params = [{transform_indices = @transform_0, window_bounds = array<i64: 8, 256>}, {transform_indices = @transform_1, window_bounds = array<i64: 128, 256>}, {transform_indices = @transform_2, window_bounds = array<i64: 1, 128>}, {transform_indices = @transform_3, window_bounds = array<i64: 8, 128>}]} {
    %c0_i32 = arith.constant 0 : i32
    %0 = arith.cmpi eq, %arg1, %c0_i32 : i32
    %1 = arith.extui %0 : i1 to i32
    %c0_i32_0 = arith.constant 0 : i32
    %2 = arith.cmpi ne, %1, %c0_i32_0 : i32
    scf.if %2 {
      %c0_10 = arith.constant 0 : index
      %c0_11 = arith.constant 0 : index
      %13 = vector.load %arg4[%c0_10, %c0_11] : memref<1x128xf32, #tpu.memory_space<vmem>>, vector<1x128xf32>
      %14 = vector.shape_cast %13 : vector<1x128xf32> to vector<1x128xf32>
      %15 = vector.broadcast %14 : vector<1x128xf32> to vector<8x128xf32>
      %c0_12 = arith.constant 0 : index
      %c0_13 = arith.constant 0 : index
      %16 = vector.load %arg6[%c0_12, %c0_13] : memref<8x128xf32, #tpu.memory_space<vmem>>, vector<8x128xf32>
      tpu.vector_store %arg6[%c0_12, %c0_13], %15 {strides = array<i32>} : memref<8x128xf32, #tpu.memory_space<vmem>>, vector<8x128xf32>,
    } else {
    }
    %c0 = arith.constant 0 : index
    %c0_1 = arith.constant 0 : index
    %3 = vector.load %arg6[%c0, %c0_1] : memref<8x128xf32, #tpu.memory_space<vmem>>, vector<8x128xf32>
    %c0_2 = arith.constant 0 : index
    %c0_3 = arith.constant 0 : index
    %4 = vector.load %arg2[%c0_2, %c0_3] : memref<8x256xf32, #tpu.memory_space<vmem>>, vector<8x256xf32>
    %5 = arith.truncf %4 : vector<8x256xf32> to vector<8x256xbf16>
    %c0_4 = arith.constant 0 : index
    %c0_5 = arith.constant 0 : index
    %6 = vector.load %arg3[%c0_4, %c0_5] : memref<128x256xbf16, #tpu.memory_space<vmem>>, vector<128x256xbf16>
    %cst = arith.constant dense<0.000000e+00> : vector<8x128xf32>
    %7 = tpu.matmul %5, %6, %cst {dimension_numbers = #tpu.dot_dimension_numbers<[1], [1], [0], [0], [0, 0, 1, 0], [], []>} : vector<8x256xbf16>, vector<128x256xbf16>, vector<8x128xf32> -> vector<8x128xf32>
    %8 = arith.addf %3, %7 : vector<8x128xf32>
    %c0_6 = arith.constant 0 : index
    %c0_7 = arith.constant 0 : index
    %9 = vector.load %arg6[%c0_6, %c0_7] : memref<8x128xf32, #tpu.memory_space<vmem>>, vector<8x128xf32>
    tpu.vector_store %arg6[%c0_6, %c0_7], %8 {strides = array<i32>} : memref<8x128xf32, #tpu.memory_space<vmem>>, vector<8x128xf32>,
    %c0_i32_8 = arith.constant 0 : i32
    %10 = arith.cmpi eq, %arg1, %c0_i32_8 : i32
    %11 = arith.extui %10 : i1 to i32
    %c0_i32_9 = arith.constant 0 : i32
    %12 = arith.cmpi ne, %11, %c0_i32_9 : i32
    scf.if %12 {
      %c0_10 = arith.constant 0 : index
      %c0_11 = arith.constant 0 : index
      %13 = vector.load %arg6[%c0_10, %c0_11] : memref<8x128xf32, #tpu.memory_space<vmem>>, vector<8x128xf32>
      %c0_12 = arith.constant 0 : index
      %c0_13 = arith.constant 0 : index
      %14 = vector.load %arg5[%c0_12, %c0_13] : memref<8x128xf32, #tpu.memory_space<vmem>>, vector<8x128xf32>
      tpu.vector_store %arg5[%c0_12, %c0_13], %13 {strides = array<i32>} : memref<8x128xf32, #tpu.memory_space<vmem>>, vector<8x128xf32>,
    } else {
    }
    return
  }
  func.func @transform_0(%arg0: i32, %arg1: i32) -> (i32, i32) {
    %c0_i32 = arith.constant 0 : i32
    %c0_i32_0 = arith.constant 0 : i32
    return %c0_i32, %arg1 : i32, i32
  }
  func.func @transform_1(%arg0: i32, %arg1: i32) -> (i32, i32) {
    %c0_i32 = arith.constant 0 : i32
    return %arg0, %arg1 : i32, i32
  }
  func.func @transform_2(%arg0: i32, %arg1: i32) -> (i32, i32) {
    %c0_i32 = arith.constant 0 : i32
    %c0_i32_0 = arith.constant 0 : i32
    return %c0_i32, %arg0 : i32, i32
  }
  func.func @transform_3(%arg0: i32, %arg1: i32) -> (i32, i32) {
    %c0_i32 = arith.constant 0 : i32
    %c0_i32_0 = arith.constant 0 : i32
    return %c0_i32, %arg0 : i32, i32
  }
}

</mosaic_0001>

<llo_original>
// kernel: word2vec_forward.3
$region0: #{word2vec_forward.3}
  #allocation0 [shape = 'u32[]', space=smem, size = 0x4, offset = 0x4, fixed_abs, tag = 'smem constant byte address 0x4 - core index']
  #allocation1 [shape = 'u32[144,128]{1,0:T(1,128)}', space=vmem, size = 0x12000, scoped, tag = 'internal scratch']
  #allocation2 [shape = 'f32[8,256]{1,0:T(8,128)}', space=vmem, size = 0x2000, scoped, tag = 'scratch operand']
  %s0 = inlined_call_operand.vmem [shape: f32[8,128], index: 0, kind: input, shape index: {}]
  %s1 = inlined_call_operand.vmem [shape: bf16[256,128], index: 1, kind: input, shape index: {}]
  %s2 = inlined_call_operand.vmem [shape: f32[1,256], index: 2, kind: input, shape index: {}]
  %s3 = inlined_call_operand.hbm [shape: f32[8,256], index: 3, kind: output, shape index: {}]
  %s4 = sld [smem:[#allocation0]]
  $region30: #{word2vec_forward.3} parent=0
    _
  %s6 = ssub.s32 1, %s4
  %s7 = scalar_select 0, %s6, %s4
  $region1: #{word2vec_forward.3} parent=0
    #allocation3 [shape = 'u8[8192]{0}', space=vmem, size = 0x2000, scoped, tag = 'output window, operand 0, single buffered']
    #allocation4 [shape = 's32[1]{0}', space=sflag, size = 0x4, scoped, tag = 'scoped memory for word2vec_forward.3']
    %8 = vsyncpa [#allocation4], 0
    // Predicated region
    $region2: #{word2vec_forward.3} parent=1 // pred_check
      _
    $region3: #{word2vec_forward.3} parent=1 // pred_check_branch
      %10 = sbr.rel (0) target = $region5
    $region4: #{word2vec_forward.3} parent=1 // pred_region
      _
    $region5: #{word2vec_forward.3} parent=1 // pred_fallthru
      _
    // Predicated region
    $region6: #{word2vec_forward.3} parent=1 // pred_check
      _
    $region7: #{word2vec_forward.3} parent=1 // pred_check_branch
      %12 = sbr.rel (0) target = $region9
    $region8: #{word2vec_forward.3} parent=1 // pred_region
      _
    $region9: #{word2vec_forward.3} parent=1 // pred_fallthru
      _
    // Predicated region
    $region10: #{word2vec_forward.3} parent=1 // pred_check
      _
    $region11: #{word2vec_forward.3} parent=1 // pred_check_branch
      %14 = sbr.rel (0) target = $region13
    $region12: #{word2vec_forward.3} parent=1 // pred_region
      _
    $region13: #{word2vec_forward.3} parent=1 // pred_fallthru
      _
    %p16 = scmp.eq.s32.totalorder 0, 0
    // Predicated region
    $region14: #{word2vec_forward.3} parent=1 // pred_check
      %p17 = pneg %p16
    $region15: #{word2vec_forward.3} parent=1 // pred_check_branch
      %19 = sbr.rel (%p17) target = $region17
    $region16: #{word2vec_forward.3} parent=1 // pred_region
      %v20 = vld [vmem:[%s2] sm:$0x3]
      %v22 = vlaneseq
      %v23 = vshrl.u32 %v22, 7
      %v24 = vsub.s32 0, %v23
      %v25 = vrot.slane %v20, %v24
      %v26 = vlaneseq
      %v27 = vshrl.u32 %v26, 7
      %v28 = vsub.s32 1, %v27
      %v29 = vrot.slane %v20, %v28
      %32 = vst [vmem:[#allocation2] sm:$0xff] %v25
      %33 = vst [vmem:[#allocation2 + $0x8] sm:$0xff] %v29
    $region17: #{word2vec_forward.3} parent=1 // pred_fallthru
      _
    %v34 = vld [vmem:[#allocation2] sm:$0xff]
    %v35 = vld [vmem:[#allocation2 + $0x8] sm:$0xff]
    %v36 = vld [vmem:[%s0] sm:$0xff]
    %v37 = vpack.c.bf16 %v36, %v36
    %v38 = vld [vmem:[%s1] sm:$0xf]
    %v39 = vld [vmem:[%s1 + $0x4] sm:$0xf]
    %v40 = vld [vmem:[%s1 + $0x8] sm:$0xf]
    %v41 = vld [vmem:[%s1 + $0xc] sm:$0xf]
    %v42 = vld [vmem:[%s1 + $0x10] sm:$0xf]
    %v43 = vld [vmem:[%s1 + $0x14] sm:$0xf]
    %v44 = vld [vmem:[%s1 + $0x18] sm:$0xf]
    %v45 = vld [vmem:[%s1 + $0x1c] sm:$0xf]
    %v46 = vld [vmem:[%s1 + $0x20] sm:$0xf]
    %v47 = vld [vmem:[%s1 + $0x24] sm:$0xf]
    %v48 = vld [vmem:[%s1 + $0x28] sm:$0xf]
    %v49 = vld [vmem:[%s1 + $0x2c] sm:$0xf]
    %v50 = vld [vmem:[%s1 + $0x30] sm:$0xf]
    %v51 = vld [vmem:[%s1 + $0x34] sm:$0xf]
    %v52 = vld [vmem:[%s1 + $0x38] sm:$0xf]
    %v53 = vld [vmem:[%s1 + $0x3c] sm:$0xf]
    %v54 = vld [vmem:[%s1 + $0x40] sm:$0xf]
    %v55 = vld [vmem:[%s1 + $0x44] sm:$0xf]
    %v56 = vld [vmem:[%s1 + $0x48] sm:$0xf]
    %v57 = vld [vmem:[%s1 + $0x4c] sm:$0xf]
    %v58 = vld [vmem:[%s1 + $0x50] sm:$0xf]
    %v59 = vld [vmem:[%s1 + $0x54] sm:$0xf]
    %v60 = vld [vmem:[%s1 + $0x58] sm:$0xf]
    %v61 = vld [vmem:[%s1 + $0x5c] sm:$0xf]
    %v62 = vld [vmem:[%s1 + $0x60] sm:$0xf]
    %v63 = vld [vmem:[%s1 + $0x64] sm:$0xf]
    %v64 = vld [vmem:[%s1 + $0x68] sm:$0xf]
    %v65 = vld [vmem:[%s1 + $0x6c] sm:$0xf]
    %v66 = vld [vmem:[%s1 + $0x70] sm:$0xf]
    %v67 = vld [vmem:[%s1 + $0x74] sm:$0xf]
    %v68 = vld [vmem:[%s1 + $0x78] sm:$0xf]
    %v69 = vld [vmem:[%s1 + $0x7c] sm:$0xf]
    %v102 = vunpack.c.l.b16 %v38
    %v103 = vunpack.c.l.b16 %v39
    %v104 = vunpack.c.l.b16 %v40
    %v105 = vunpack.c.l.b16 %v41
    %v106 = vunpack.c.l.b16 %v42
    %v107 = vunpack.c.l.b16 %v43
    %v108 = vunpack.c.l.b16 %v44
    %v109 = vunpack.c.l.b16 %v45
    %v110 = vunpack.c.l.b16 %v46
    %v111 = vunpack.c.l.b16 %v47
    %v112 = vunpack.c.l.b16 %v48
    %v113 = vunpack.c.l.b16 %v49
    %v114 = vunpack.c.l.b16 %v50
    %v115 = vunpack.c.l.b16 %v51
    %v116 = vunpack.c.l.b16 %v52
    %v117 = vunpack.c.l.b16 %v53
    %v118 = vunpack.c.l.b16 %v54
    %v119 = vunpack.c.l.b16 %v55
    %v120 = vunpack.c.l.b16 %v56
    %v121 = vunpack.c.l.b16 %v57
    %v122 = vunpack.c.l.b16 %v58
    %v123 = vunpack.c.l.b16 %v59
    %v124 = vunpack.c.l.b16 %v60
    %v125 = vunpack.c.l.b16 %v61
    %v126 = vunpack.c.l.b16 %v62
    %v127 = vunpack.c.l.b16 %v63
    %v128 = vunpack.c.l.b16 %v64
    %v129 = vunpack.c.l.b16 %v65
    %v130 = vunpack.c.l.b16 %v66
    %v131 = vunpack.c.l.b16 %v67
    %v132 = vunpack.c.l.b16 %v68
    %v133 = vunpack.c.l.b16 %v69
    %v134 = vpack.c.b16 %v103, %v102
    %v135 = vpack.c.b16 %v105, %v104
    %v136 = vpack.c.b16 %v107, %v106
    %v137 = vpack.c.b16 %v109, %v108
    %v138 = vpack.c.b16 %v111, %v110
    %v139 = vpack.c.b16 %v113, %v112
    %v140 = vpack.c.b16 %v115, %v114
    %v141 = vpack.c.b16 %v117, %v116
    %v142 = vpack.c.b16 %v119, %v118
    %v143 = vpack.c.b16 %v121, %v120
    %v144 = vpack.c.b16 %v123, %v122
    %v145 = vpack.c.b16 %v125, %v124
    %v146 = vpack.c.b16 %v127, %v126
    %v147 = vpack.c.b16 %v129, %v128
    %v148 = vpack.c.b16 %v131, %v130
    %v149 = vpack.c.b16 %v133, %v132
    %166 = vmatprep.subr.bf16.mxu0 0
    %167 = vmatpush1.bf16.xpose.msra.mxu0 %v134
    %168 = vmatprep.subr.bf16.mxu0 0
    %169 = vmatpush1.bf16.xpose.msra.mxu0 %v135
    %170 = vmatprep.subr.bf16.mxu0 0
    %171 = vmatpush1.bf16.xpose.msra.mxu0 %v136
    %172 = vmatprep.subr.bf16.mxu0 0
    %173 = vmatpush1.bf16.xpose.msra.mxu0 %v137
    %174 = vmatprep.subr.bf16.mxu0 0
    %175 = vmatpush1.bf16.xpose.msra.mxu0 %v138
    %176 = vmatprep.subr.bf16.mxu0 0
    %177 = vmatpush1.bf16.xpose.msra.mxu0 %v139
    %178 = vmatprep.subr.bf16.mxu0 0
    %179 = vmatpush1.bf16.xpose.msra.mxu0 %v140
    %180 = vmatprep.subr.bf16.mxu0 0
    %181 = vmatpush1.bf16.xpose.msra.mxu0 %v141
    %182 = vmatprep.subr.bf16.mxu0 0
    %183 = vmatpush1.bf16.xpose.msra.mxu0 %v142
    %184 = vmatprep.subr.bf16.mxu0 0
    %185 = vmatpush1.bf16.xpose.msra.mxu0 %v143
    %186 = vmatprep.subr.bf16.mxu0 0
    %187 = vmatpush1.bf16.xpose.msra.mxu0 %v144
    %188 = vmatprep.subr.bf16.mxu0 0
    %189 = vmatpush1.bf16.xpose.msra.mxu0 %v145
    %190 = vmatprep.subr.bf16.mxu0 0
    %191 = vmatpush1.bf16.xpose.msra.mxu0 %v146
    %192 = vmatprep.subr.bf16.mxu0 0
    %193 = vmatpush1.bf16.xpose.msra.mxu0 %v147
    %194 = vmatprep.subr.bf16.mxu0 0
    %195 = vmatpush1.bf16.xpose.msra.mxu0 %v148
    %196 = vmatprep.subr.bf16.mxu0 0
    %197 = vmatpush1.bf16.xpose.msra.mxu0 %v149
    %198 = vmatprep.mubr.bf16.mxu0 0
    %199 = vmatmul.mubr.bf16.gmra.mrb[0].mxu0 %v37
    %v200 = vpop.f32.mrb[0].mxu0
    %v201 = vadd.f32 0.0, %v200
    %v202 = vpop.f32.mrb[0].mxu0
    %v203 = vadd.f32 0.0, %v202
    %v204 = vpop.f32.mrb[0].mxu0
    %v205 = vpop.f32.mrb[0].mxu0
    %206 = vdwg.mxu0
    %v207 = vadd.f32 %v34, %v201
    %v208 = vadd.f32 %v35, %v203
    %209 = vst [vmem:[#allocation2] sm:$0xff] %v207
    %210 = vst [vmem:[#allocation2 + $0x8] sm:$0xff] %v208
    // Predicated region
    $region18: #{word2vec_forward.3} parent=1 // pred_check
      %p211 = pneg %p16
    $region19: #{word2vec_forward.3} parent=1 // pred_check_branch
      %213 = sbr.rel (%p211) target = $region21
    $region20: #{word2vec_forward.3} parent=1 // pred_region
      %v214 = vld [vmem:[#allocation2] sm:$0xff]
      %v215 = vld [vmem:[#allocation2 + $0x8] sm:$0xff]
      %216 = vst [vmem:[#allocation3] sm:$0xff] %v214
      %217 = vst [vmem:[#allocation3 + $0x8] sm:$0xff] %v215
    $region21: #{word2vec_forward.3} parent=1 // pred_fallthru
      _
    // Predicated region
    $region22: #{word2vec_forward.3} parent=1 // pred_check
      _
    $region23: #{word2vec_forward.3} parent=1 // pred_check_branch
      %219 = sbr.rel (0) target = $region25
    $region24: #{word2vec_forward.3} parent=1 // pred_region
      %s221 = ssub.s32 256, 256
      %222 = vsyncadd [#allocation4], %s221
      %s224 = sshll.u32 [#allocation3], 4
      %s225 = int_to_ptr.vmem [resolvable:$true] %s224
      %227 = dma.vmem_to_hbm [thread:$0]  %s225, 256, %s3, [#allocation4]
    $region25: #{word2vec_forward.3} parent=1 // pred_fallthru
      _
    // Predicated region
    $region26: #{word2vec_forward.3} parent=1 // pred_check
      _
    $region27: #{word2vec_forward.3} parent=1 // pred_check_branch
      %229 = sbr.rel (0) target = $region29
    $region28: #{word2vec_forward.3} parent=1 // pred_region
      %230 = dma.done [#allocation4], 256
    $region29: #{word2vec_forward.3} parent=1 // pred_fallthru
      _
    %231 = vsyncpa [#allocation4], 1

// kernel: word2vec_forward.2
$region0: #{word2vec_forward.2}
  #allocation0 [shape = 'u32[]', space=smem, size = 0x4, offset = 0x4, fixed_abs, tag = 'smem constant byte address 0x4 - core index']
  #allocation1 [shape = 'u32[144,128]{1,0:T(1,128)}', space=vmem, size = 0x12000, scoped, tag = 'internal scratch']
  #allocation2 [shape = 'f32[8,128]{1,0:T(8,128)}', space=vmem, size = 0x1000, scoped, tag = 'scratch operand']
  %s0 = inlined_call_operand.hbm [shape: f32[8,256], index: 0, kind: input, shape index: {}]
  %s1 = inlined_call_operand.hbm [shape: bf16[128,256], index: 1, kind: input, shape index: {}]
  %s2 = inlined_call_operand.hbm [shape: f32[1,128], index: 2, kind: input, shape index: {}]
  %s3 = inlined_call_operand.vmem [shape: f32[8,128], index: 3, kind: output, shape index: {}]
  %s4 = sld [smem:[#allocation0]]
  $region42: #{word2vec_forward.2} parent=0
    _
  %s6 = ssub.s32 1, %s4
  %s7 = scalar_select 0, %s6, %s4
  $region1: #{word2vec_forward.2} parent=0
    #allocation3 [shape = 'u8[8192]{0}', space=vmem, size = 0x2000, scoped, tag = 'input window, operand 0, single buffered']
    #allocation4 [shape = 's32[1]{0}', space=sflag, size = 0x4, scoped, tag = 'scoped memory for word2vec_forward.2']
    #allocation5 [shape = 'u8[65536]{0}', space=vmem, size = 0x10000, scoped, tag = 'input window, operand 1, single buffered']
    #allocation6 [shape = 's32[1]{0}', space=sflag, size = 0x4, scoped, tag = 'scoped memory for word2vec_forward.2']
    #allocation7 [shape = 'u8[512]{0}', space=vmem, size = 0x400, scoped, tag = 'input window, operand 2, single buffered']
    %8 = vsyncpa [#allocation4], 0
    %9 = vsyncpa [#allocation6], 0
    // Predicated region
    $region2: #{word2vec_forward.2} parent=1 // pred_check
      _
    $region3: #{word2vec_forward.2} parent=1 // pred_check_branch
      %11 = sbr.rel (0) target = $region5
    $region4: #{word2vec_forward.2} parent=1 // pred_region
      %s13 = ssub.s32 256, 256
      %14 = vsyncadd [#allocation4], %s13
      %s16 = sshll.u32 [#allocation3], 4
      %s17 = int_to_ptr.vmem [resolvable:$true] %s16
      %19 = dma.hbm_to_vmem [thread:$0]  %s0, 256, %s17, [#allocation4]
    $region5: #{word2vec_forward.2} parent=1 // pred_fallthru
      _
    // Predicated region
    $region6: #{word2vec_forward.2} parent=1 // pred_check
      _
    $region7: #{word2vec_forward.2} parent=1 // pred_check_branch
      %21 = sbr.rel (0) target = $region9
    $region8: #{word2vec_forward.2} parent=1 // pred_region
      %s23 = ssub.s32 2048, 2048
      %24 = vsyncadd [#allocation6], %s23
      %s25 = sshll.u32 [#allocation5], 4
      %s26 = int_to_ptr.vmem [resolvable:$true] %s25
      %31 = dma.hbm_to_vmem [thread:$0]  %s1, 2048, %s26, [#allocation6], 128, 128, 8
    $region9: #{word2vec_forward.2} parent=1 // pred_fallthru
      _
    // Predicated region
    $region10: #{word2vec_forward.2} parent=1 // pred_check
      _
    $region11: #{word2vec_forward.2} parent=1 // pred_check_branch
      %33 = sbr.rel (0) target = $region13
    $region12: #{word2vec_forward.2} parent=1 // pred_region
      %s35 = ssub.s32 16, 16
      %36 = vsyncadd [#allocation6], %s35
      %s38 = sshll.u32 [#allocation7], 4
      %s39 = int_to_ptr.vmem [resolvable:$true] %s38
      %41 = dma.hbm_to_vmem [thread:$0]  %s2, 16, %s39, [#allocation6]
    $region13: #{word2vec_forward.2} parent=1 // pred_fallthru
      _
    // Predicated region
    $region14: #{word2vec_forward.2} parent=1 // pred_check
      _
    $region15: #{word2vec_forward.2} parent=1 // pred_check_branch
      %43 = sbr.rel (0) target = $region17
    $region16: #{word2vec_forward.2} parent=1 // pred_region
      %44 = dma.done [#allocation4], 256
    $region17: #{word2vec_forward.2} parent=1 // pred_fallthru
      _
    // Predicated region
    $region18: #{word2vec_forward.2} parent=1 // pred_check
      _
    $region19: #{word2vec_forward.2} parent=1 // pred_check_branch
      %46 = sbr.rel (0) target = $region21
    $region20: #{word2vec_forward.2} parent=1 // pred_region
      %47 = dma.done [#allocation6], 2048
    $region21: #{word2vec_forward.2} parent=1 // pred_fallthru
      _
    // Predicated region
    $region22: #{word2vec_forward.2} parent=1 // pred_check
      _
    $region23: #{word2vec_forward.2} parent=1 // pred_check_branch
      %49 = sbr.rel (0) target = $region25
    $region24: #{word2vec_forward.2} parent=1 // pred_region
      %50 = dma.done [#allocation6], 16
    $region25: #{word2vec_forward.2} parent=1 // pred_fallthru
      _
    %p52 = scmp.eq.s32.totalorder 0, 0
    // Predicated region
    $region26: #{word2vec_forward.2} parent=1 // pred_check
      %p53 = pneg %p52
    $region27: #{word2vec_forward.2} parent=1 // pred_check_branch
      %55 = sbr.rel (%p53) target = $region29
    $region28: #{word2vec_forward.2} parent=1 // pred_region
      %v56 = vld [vmem:[#allocation7] sm:$0x1]
      %v58 = vlaneseq
      %v59 = vshrl.u32 %v58, 7
      %v60 = vsub.s32 0, %v59
      %v61 = vrot.slane %v56, %v60
      %63 = vst [vmem:[#allocation2] sm:$0xff] %v61
    $region29: #{word2vec_forward.2} parent=1 // pred_fallthru
      _
    %v64 = vld [vmem:[#allocation2] sm:$0xff]
    %v65 = vld [vmem:[#allocation3] sm:$0xff]
    %v66 = vld [vmem:[#allocation3 + $0x8] sm:$0xff]
    %v67 = vpack.c.bf16 %v65, %v65
    %v68 = vpack.c.bf16 %v66, %v66
    %v69 = vld [vmem:[#allocation5] sm:$0xff]
    %v70 = vld [vmem:[#allocation5 + $0x8] sm:$0xff]
    %v71 = vld [vmem:[#allocation5 + $0x10] sm:$0xff]
    %v72 = vld [vmem:[#allocation5 + $0x18] sm:$0xff]
    %v73 = vld [vmem:[#allocation5 + $0x20] sm:$0xff]
    %v74 = vld [vmem:[#allocation5 + $0x28] sm:$0xff]
    %v75 = vld [vmem:[#allocation5 + $0x30] sm:$0xff]
    %v76 = vld [vmem:[#allocation5 + $0x38] sm:$0xff]
    %v77 = vld [vmem:[#allocation5 + $0x40] sm:$0xff]
    %v78 = vld [vmem:[#allocation5 + $0x48] sm:$0xff]
    %v79 = vld [vmem:[#allocation5 + $0x50] sm:$0xff]
    %v80 = vld [vmem:[#allocation5 + $0x58] sm:$0xff]
    %v81 = vld [vmem:[#allocation5 + $0x60] sm:$0xff]
    %v82 = vld [vmem:[#allocation5 + $0x68] sm:$0xff]
    %v83 = vld [vmem:[#allocation5 + $0x70] sm:$0xff]
    %v84 = vld [vmem:[#allocation5 + $0x78] sm:$0xff]
    %v101 = vunpack.c.l.b16 %v69
    %v102 = vunpack.c.h.b16 %v69
    %v103 = vunpack.c.l.b16 %v70
    %v104 = vunpack.c.h.b16 %v70
    %v105 = vunpack.c.l.b16 %v71
    %v106 = vunpack.c.h.b16 %v71
    %v107 = vunpack.c.l.b16 %v72
    %v108 = vunpack.c.h.b16 %v72
    %v109 = vunpack.c.l.b16 %v73
    %v110 = vunpack.c.h.b16 %v73
    %v111 = vunpack.c.l.b16 %v74
    %v112 = vunpack.c.h.b16 %v74
    %v113 = vunpack.c.l.b16 %v75
    %v114 = vunpack.c.h.b16 %v75
    %v115 = vunpack.c.l.b16 %v76
    %v116 = vunpack.c.h.b16 %v76
    %v117 = vunpack.c.l.b16 %v77
    %v118 = vunpack.c.h.b16 %v77
    %v119 = vunpack.c.l.b16 %v78
    %v120 = vunpack.c.h.b16 %v78
    %v121 = vunpack.c.l.b16 %v79
    %v122 = vunpack.c.h.b16 %v79
    %v123 = vunpack.c.l.b16 %v80
    %v124 = vunpack.c.h.b16 %v80
    %v125 = vunpack.c.l.b16 %v81
    %v126 = vunpack.c.h.b16 %v81
    %v127 = vunpack.c.l.b16 %v82
    %v128 = vunpack.c.h.b16 %v82
    %v129 = vunpack.c.l.b16 %v83
    %v130 = vunpack.c.h.b16 %v83
    %v131 = vunpack.c.l.b16 %v84
    %v132 = vunpack.c.h.b16 %v84
    %v133 = vpack.c.b16 %v103, %v101
    %v134 = vpack.c.b16 %v104, %v102
    %v135 = vpack.c.b16 %v107, %v105
    %v136 = vpack.c.b16 %v108, %v106
    %v137 = vpack.c.b16 %v111, %v109
    %v138 = vpack.c.b16 %v112, %v110
    %v139 = vpack.c.b16 %v115, %v113
    %v140 = vpack.c.b16 %v116, %v114
    %v141 = vpack.c.b16 %v119, %v117
    %v142 = vpack.c.b16 %v120, %v118
    %v143 = vpack.c.b16 %v123, %v121
    %v144 = vpack.c.b16 %v124, %v122
    %v145 = vpack.c.b16 %v127, %v125
    %v146 = vpack.c.b16 %v128, %v126
    %v147 = vpack.c.b16 %v131, %v129
    %v148 = vpack.c.b16 %v132, %v130
    %165 = vmatprep.subr.bf16.mxu0 %v134
    %166 = vmatpush1.bf16.xpose.msra.mxu0 %v133
    %167 = vmatprep.subr.bf16.mxu0 %v136
    %168 = vmatpush1.bf16.xpose.msra.mxu0 %v135
    %169 = vmatprep.subr.bf16.mxu0 %v138
    %170 = vmatpush1.bf16.xpose.msra.mxu0 %v137
    %171 = vmatprep.subr.bf16.mxu0 %v140
    %172 = vmatpush1.bf16.xpose.msra.mxu0 %v139
    %173 = vmatprep.subr.bf16.mxu0 %v142
    %174 = vmatpush1.bf16.xpose.msra.mxu0 %v141
    %175 = vmatprep.subr.bf16.mxu0 %v144
    %176 = vmatpush1.bf16.xpose.msra.mxu0 %v143
    %177 = vmatprep.subr.bf16.mxu0 %v146
    %178 = vmatpush1.bf16.xpose.msra.mxu0 %v145
    %179 = vmatprep.subr.bf16.mxu0 %v148
    %180 = vmatpush1.bf16.xpose.msra.mxu0 %v147
    %181 = vmatprep.subr.bf16.mxu0 0
    %182 = vmatpush1.bf16.xpose.msra.mxu0 0
    %183 = vmatprep.subr.bf16.mxu0 0
    %184 = vmatpush1.bf16.xpose.msra.mxu0 0
    %185 = vmatprep.subr.bf16.mxu0 0
    %186 = vmatpush1.bf16.xpose.msra.mxu0 0
    %187 = vmatprep.subr.bf16.mxu0 0
    %188 = vmatpush1.bf16.xpose.msra.mxu0 0
    %189 = vmatprep.subr.bf16.mxu0 0
    %190 = vmatpush1.bf16.xpose.msra.mxu0 0
    %191 = vmatprep.subr.bf16.mxu0 0
    %192 = vmatpush1.bf16.xpose.msra.mxu0 0
    %193 = vmatprep.subr.bf16.mxu0 0
    %194 = vmatpush1.bf16.xpose.msra.mxu0 0
    %195 = vmatprep.subr.bf16.mxu0 0
    %196 = vmatpush1.bf16.xpose.msra.mxu0 0
    %197 = vmatprep.mubr.bf16.mxu0 %v68
    %198 = vmatmul.mubr.bf16.gmra.mrb[0].mxu0 %v67
    %v199 = vpop.f32.mrb[0].mxu0
    %v200 = vadd.f32 0.0, %v199
    %v201 = vpop.f32.mrb[0].mxu0
    %v202 = vpop.f32.mrb[0].mxu0
    %v203 = vpop.f32.mrb[0].mxu0
    %204 = vdwg.mxu0
    %v205 = vadd.f32 %v64, %v200
    %206 = vst [vmem:[#allocation2] sm:$0xff] %v205
    // Predicated region
    $region30: #{word2vec_forward.2} parent=1 // pred_check
      %p207 = pneg %p52
    $region31: #{word2vec_forward.2} parent=1 // pred_check_branch
      %209 = sbr.rel (%p207) target = $region33
    $region32: #{word2vec_forward.2} parent=1 // pred_region
      %v210 = vld [vmem:[#allocation2] sm:$0xff]
      %211 = vst [vmem:[%s3] sm:$0xff] %v210
    $region33: #{word2vec_forward.2} parent=1 // pred_fallthru
      _
    // Predicated region
    $region34: #{word2vec_forward.2} parent=1 // pred_check
      _
    $region35: #{word2vec_forward.2} parent=1 // pred_check_branch
      %213 = sbr.rel (0) target = $region37
    $region36: #{word2vec_forward.2} parent=1 // pred_region
      _
    $region37: #{word2vec_forward.2} parent=1 // pred_fallthru
      _
    // Predicated region
    $region38: #{word2vec_forward.2} parent=1 // pred_check
      _
    $region39: #{word2vec_forward.2} parent=1 // pred_check_branch
      %215 = sbr.rel (0) target = $region41
    $region40: #{word2vec_forward.2} parent=1 // pred_region
      _
    $region41: #{word2vec_forward.2} parent=1 // pred_fallthru
      _
    %216 = vsyncpa [#allocation4], 1
    %217 = vsyncpa [#allocation6], 1

</llo_original>
